<compile_context>
chip_gen: v5e
topology: v5e:2x2
jax: 0.10.0
libtpu: 0.0.40
codegen_flags: <defaults>
</compile_context>

<pallas_src>
import functools
import math

import jax
import jax.numpy as jnp
from jax.experimental import pallas as pl
from jax.experimental.pallas import tpu as pltpu


def _tpu_vmem_capacity_bytes():
    try:
        return int(pltpu.get_tpu_info().vmem_capacity_bytes)
    except Exception:
        return 64 * 1024 * 1024  # conservative fallback (v7x-sized)


def _largest_divisor_leq(n, target):
    """Largest divisor of n that is <= target (>=1)."""
    target = max(1, min(int(n), int(target)))
    for b in range(target, 0, -1):
        if n % b == 0:
            return b
    return 1


# ---------------------------------------------------------------------------
# Pass 1: fused Q/K/V projection (heads folded into one grid step).
# ---------------------------------------------------------------------------
def _qkv_kernel(x_ref, w_ref, b_ref, q_ref, k_ref, v_ref,
                *, n_head, d_k, compute_dtype):
    x = x_ref[0].astype(compute_dtype)                              # (Tr, D)
    for h in range(n_head):                                         # static loop, weights resident
        # One (Tr, D) @ (D, 3*d_k) matmul per head: N = 3*d_k fills the MXU better
        # than three N = d_k matmuls.  Scale is pre-folded into the Q columns.
        qkv = jnp.dot(x, w_ref[h], preferred_element_type=jnp.float32) + b_ref[h]
        q_ref[0, h] = qkv[:, :d_k].astype(q_ref.dtype)
        k_ref[0, h] = qkv[:, d_k:2 * d_k].astype(k_ref.dtype)
        v_ref[0, h] = qkv[:, 2 * d_k:].astype(v_ref.dtype)


# ---------------------------------------------------------------------------
# Pass 2: flash attention (hp heads per step) + fused output projection.
#   grid = (B, num_q, n_head_groups, num_k); key axis innermost ("arbitrary"),
#   head-group axis also "arbitrary" (projection accumulates across it).
# ---------------------------------------------------------------------------
def _flash_attn_proj_kernel(q_ref, k_ref, v_ref, wo_ref, o_ref,
                            m_ref, l_ref, acc_ref, proj_ref,
                            *, heads_per_step, approx_recip, compute_dtype):
    g = pl.program_id(2)
    ki = pl.program_id(3)
    is_last_k = ki == pl.num_programs(3) - 1

    @pl.when(ki == 0)
    def _init_softmax():
        m_ref[...] = jnp.full(m_ref.shape, -jnp.inf, m_ref.dtype)
        l_ref[...] = jnp.zeros(l_ref.shape, l_ref.dtype)
        acc_ref[...] = jnp.zeros(acc_ref.shape, acc_ref.dtype)

    @pl.when(jnp.logical_and(ki == 0, g == 0))
    def _init_proj():
        proj_ref[...] = jnp.zeros(proj_ref.shape, proj_ref.dtype)

    q = q_ref[0]                                                    # (hp, Tq, d_k), pre-scaled
    k = k_ref[0]                                                    # (hp, Tk, d_k)
    v = v_ref[0]                                                    # (hp, Tk, d_k)

    # scores = q @ k^T per head (batched over the head group, no explicit transpose).
    s = jnp.einsum("hqd,hkd->hqk", q, k,
                   preferred_element_type=jnp.float32)              # (hp, Tq, Tk)

    m_prev = m_ref[...]
    m_new = jnp.maximum(m_prev, jnp.max(s, axis=-1, keepdims=True))
    alpha = jnp.exp(m_prev - m_new)
    p = jnp.exp(s - m_new)
    l_ref[...] = alpha * l_ref[...] + jnp.sum(p, axis=-1, keepdims=True)
    acc_ref[...] = alpha * acc_ref[...] + jnp.einsum(
        "hqk,hkd->hqd", p.astype(v.dtype), v,
        preferred_element_type=jnp.float32)
    m_ref[...] = m_new

    @pl.when(is_last_k)
    def _project():
        # Finalize softmax for this head group and fold in the output projection,
        # accumulating the lane-dense (Tq, D) result across head groups.
        inv_l = pl.reciprocal(l_ref[...], approx=approx_recip)      # EUP when approx
        ctx = (acc_ref[...] * inv_l).astype(compute_dtype)          # (hp, Tq, d_k)
        proj = proj_ref[...]
        for h in range(heads_per_step):                             # static loop
            proj = proj + jnp.dot(ctx[h], wo_ref[h],
                                  preferred_element_type=jnp.float32)
        proj_ref[...] = proj

    @pl.when(jnp.logical_and(is_last_k, g == pl.num_programs(2) - 1))
    def _store():
        o_ref[0] = proj_ref[...].astype(o_ref.dtype)


# ---------------------------------------------------------------------------
# Pass 3: residual + LN1 + FFN (chunked over d_ff) + residual + LN2.
# ---------------------------------------------------------------------------
def _ln_ffn_kernel(attn_ref, x_ref, bo_ref, g1_ref, be1_ref,
                   w1_ref, b1_ref, w2_ref, b2_ref, g2_ref, be2_ref,
                   o_ref, x1f_ref, x1c_ref, acc_ref,
                   *, eps, compute_dtype):
    f = pl.program_id(2)

    @pl.when(f == 0)
    def _residual_ln1():
        # attention output (projection already applied in pass 2) + bias + residual.
        h1 = x_ref[0].astype(jnp.float32) + attn_ref[0] + bo_ref[...]
        mu = jnp.mean(h1, axis=-1, keepdims=True)
        var = jnp.mean((h1 - mu) ** 2, axis=-1, keepdims=True)
        x1 = (h1 - mu) * jax.lax.rsqrt(var + eps) * g1_ref[...] + be1_ref[...]
        x1f_ref[...] = x1                                  # f32 copy for residual / LN2
        x1c_ref[...] = x1.astype(compute_dtype)            # hoisted cast for FFN chunks
        acc_ref[...] = jnp.broadcast_to(b2_ref[...], acc_ref.shape)   # b2 added once

    # FFN chunk over d_ff: (Tr,D)@(D,Tf) -> relu -> (Tr,Tf)@(Tf,D), f32 accumulation.
    hc = jnp.dot(x1c_ref[...], w1_ref[...],
                 preferred_element_type=jnp.float32) + b1_ref[...]
    hc = jnp.maximum(hc, 0.0).astype(compute_dtype)
    acc_ref[...] += jnp.dot(hc, w2_ref[...], preferred_element_type=jnp.float32)

    @pl.when(f == pl.num_programs(2) - 1)
    def _ln2_store():
        h2 = x1f_ref[...] + acc_ref[...]
        mu2 = jnp.mean(h2, axis=-1, keepdims=True)
        var2 = jnp.mean((h2 - mu2) ** 2, axis=-1, keepdims=True)
        out = (h2 - mu2) * jax.lax.rsqrt(var2 + eps) * g2_ref[...] + be2_ref[...]
        o_ref[0] = out.astype(o_ref.dtype)


# ---------------------------------------------------------------------------
# Wrapper
# ---------------------------------------------------------------------------
def transformer_encoder_layer(src, params, *, n_head, eps=1e-5,
                              compute_dtype=jnp.bfloat16,
                              block_r=None, block_q=None, block_k=None,
                              block_f=None, heads_per_step=None):
    """src: (B, S, D) f32.  params: dict of (in, out)-layout weights/biases."""
    B, S, D = src.shape
    assert D % n_head == 0, "d_model must be divisible by n_head"
    d_k = D // n_head
    d_ff = params["w1"].shape[1]

    # ---- generation-gated tiling / VMEM budget (v5e/v6e: 128 MiB, v7x: 64 MiB) ----
    vmem_cap = _tpu_vmem_capacity_bytes()
    big_vmem = vmem_cap >= 100 * 1024 * 1024
    vmem_limit = int(min(vmem_cap * 3 // 4, 96 * 1024 * 1024))

    block_r = _largest_divisor_leq(S, block_r if block_r is not None else 512)
    block_q = _largest_divisor_leq(
        S, block_q if block_q is not None else (512 if big_vmem else 256))
    block_k = _largest_divisor_leq(
        S, block_k if block_k is not None else (1024 if big_vmem else 512))
    block_f = _largest_divisor_leq(d_ff, block_f if block_f is not None else 512)

    # heads per pass-2 grid step: amortize step overhead when d_k < 128.
    hp_target = heads_per_step if heads_per_step is not None else max(
        1, min(4, 128 // max(d_k, 1)))
    hp = 1
    for c in range(1, min(int(hp_target), n_head) + 1):
        if n_head % c == 0:
            hp = c
    n_hg = n_head // hp

    num_r = S // block_r
    num_q = S // block_q
    num_k = S // block_k
    num_f = d_ff // block_f

    cdt = compute_dtype
    f32 = jnp.float32
    approx_recip = jnp.dtype(cdt) != jnp.dtype(jnp.float32)
    scale = 1.0 / math.sqrt(d_k)

    # ---- host-side re-layout: head-major fused QKV weights, scale folded into Q ----
    wq_h = (params["wq"] * scale).reshape(D, n_head, d_k)
    wk_h = params["wk"].reshape(D, n_head, d_k)
    wv_h = params["wv"].reshape(D, n_head, d_k)
    wqkv = jnp.concatenate([wq_h, wk_h, wv_h], axis=-1)          # (D, H, 3*d_k)
    wqkv = wqkv.transpose(1, 0, 2).astype(cdt)                   # (H, D, 3*d_k)

    bq_h = (params["bq"] * scale).reshape(n_head, 1, d_k)
    bk_h = params["bk"].reshape(n_head, 1, d_k)
    bv_h = params["bv"].reshape(n_head, 1, d_k)
    bqkv = jnp.concatenate([bq_h, bk_h, bv_h], axis=-1).astype(f32)   # (H, 1, 3*d_k)

    wo_h = params["wo"].reshape(n_head, d_k, D).astype(cdt)      # (H, d_k, D)
    w1 = params["w1"].astype(cdt)
    w2 = params["w2"].astype(cdt)
    bo = params["bo"].astype(f32)
    b1 = params["b1"].astype(f32)
    b2 = params["b2"].astype(f32)
    g1 = params["g1"].astype(f32)
    be1 = params["be1"].astype(f32)
    g2 = params["g2"].astype(f32)
    be2 = params["be2"].astype(f32)

    # -------------------- pass 1: Q/K/V projection --------------------
    q, k, v = pl.pallas_call(
        functools.partial(_qkv_kernel, n_head=n_head, d_k=d_k, compute_dtype=cdt),
        out_shape=(jax.ShapeDtypeStruct((B, n_head, S, d_k), cdt),
                   jax.ShapeDtypeStruct((B, n_head, S, d_k), cdt),
                   jax.ShapeDtypeStruct((B, n_head, S, d_k), cdt)),
        grid=(B, num_r),
        in_specs=[
            pl.BlockSpec((1, block_r, D), lambda b, r: (b, r, 0)),
            pl.BlockSpec((n_head, D, 3 * d_k), lambda b, r: (0, 0, 0)),   # resident
            pl.BlockSpec((n_head, 1, 3 * d_k), lambda b, r: (0, 0, 0)),   # resident
        ],
        out_specs=(
            pl.BlockSpec((1, n_head, block_r, d_k), lambda b, r: (b, 0, r, 0)),
            pl.BlockSpec((1, n_head, block_r, d_k), lambda b, r: (b, 0, r, 0)),
            pl.BlockSpec((1, n_head, block_r, d_k), lambda b, r: (b, 0, r, 0)),
        ),
        compiler_params=pltpu.CompilerParams(
            dimension_semantics=("parallel", "parallel"),
            vmem_limit_bytes=vmem_limit),
    )(src, wqkv, bqkv)

    # ---------- pass 2: flash attention + fused output projection ----------
    # NOTE: softmax/projection accumulators require g (head-group) and ki (key) to be
    # the two innermost, "arbitrary" grid axes — do not reorder.
    attn = pl.pallas_call(
        functools.partial(_flash_attn_proj_kernel, heads_per_step=hp,
                          approx_recip=approx_recip, compute_dtype=cdt),
        out_shape=jax.ShapeDtypeStruct((B, S, D), jnp.float32),
        grid=(B, num_q, n_hg, num_k),
        in_specs=[
            pl.BlockSpec((1, hp, block_q, d_k), lambda b, qi, g, ki: (b, g, qi, 0)),
            pl.BlockSpec((1, hp, block_k, d_k), lambda b, qi, g, ki: (b, g, ki, 0)),
            pl.BlockSpec((1, hp, block_k, d_k), lambda b, qi, g, ki: (b, g, ki, 0)),
            pl.BlockSpec((hp, d_k, D), lambda b, qi, g, ki: (g, 0, 0)),   # Wo group
        ],
        out_specs=pl.BlockSpec((1, block_q, D), lambda b, qi, g, ki: (b, qi, 0)),
        scratch_shapes=[
            pltpu.VMEM((hp, block_q, 1), jnp.float32),     # running max
            pltpu.VMEM((hp, block_q, 1), jnp.float32),     # running denom
            pltpu.VMEM((hp, block_q, d_k), jnp.float32),   # running context
            pltpu.VMEM((block_q, D), jnp.float32),         # projected output accumulator
        ],
        compiler_params=pltpu.CompilerParams(
            dimension_semantics=("parallel", "parallel", "arbitrary", "arbitrary"),
            vmem_limit_bytes=vmem_limit),
    )(q, k, v, wo_h)

    # ---------- pass 3: residual + LN1 + FFN (d_ff-chunked) + LN2 ----------
    out = pl.pallas_call(
        functools.partial(_ln_ffn_kernel, eps=eps, compute_dtype=cdt),
        out_shape=jax.ShapeDtypeStruct((B, S, D), src.dtype),
        grid=(B, num_r, num_f),
        in_specs=[
            pl.BlockSpec((1, block_r, D), lambda b, r, f: (b, r, 0)),   # attn (pass 2)
            pl.BlockSpec((1, block_r, D), lambda b, r, f: (b, r, 0)),   # src
            pl.BlockSpec((1, D), lambda b, r, f: (0, 0)),               # bo
            pl.BlockSpec((1, D), lambda b, r, f: (0, 0)),               # g1
            pl.BlockSpec((1, D), lambda b, r, f: (0, 0)),               # be1
            pl.BlockSpec((D, block_f), lambda b, r, f: (0, f)),         # w1 chunk
            pl.BlockSpec((1, block_f), lambda b, r, f: (0, f)),         # b1 chunk
            pl.BlockSpec((block_f, D), lambda b, r, f: (f, 0)),         # w2 chunk
            pl.BlockSpec((1, D), lambda b, r, f: (0, 0)),               # b2
            pl.BlockSpec((1, D), lambda b, r, f: (0, 0)),               # g2
            pl.BlockSpec((1, D), lambda b, r, f: (0, 0)),               # be2
        ],
        out_specs=pl.BlockSpec((1, block_r, D), lambda b, r, f: (b, r, 0)),
        scratch_shapes=[
            pltpu.VMEM((block_r, D), jnp.float32),   # x1 (f32, residual / LN2)
            pltpu.VMEM((block_r, D), cdt),           # x1 (compute dtype, FFN operand)
            pltpu.VMEM((block_r, D), jnp.float32),   # FFN accumulator (+ b2)
        ],
        compiler_params=pltpu.CompilerParams(
            dimension_semantics=("parallel", "parallel", "arbitrary"),
            vmem_limit_bytes=vmem_limit),
    )(attn, src, bo, g1, be1, w1, b1, w2, b2, g2, be2)

    return out


# ---------------------------------------------------------------------------
# Pure-JAX reference mirroring the PyTorch forward (dropout = identity).
# ---------------------------------------------------------------------------
def _reference(src, params, *, n_head, eps=1e-5):
    B, S, D = src.shape
    d_k = D // n_head

    def lin(x, w, b):
        return x @ w + b

    q = lin(src, params["wq"], params["bq"]).reshape(B, S, n_head, d_k).transpose(0, 2, 1, 3)
    k = lin(src, params["wk"], params["bk"]).reshape(B, S, n_head, d_k).transpose(0, 2, 1, 3)
    v = lin(src, params["wv"], params["bv"]).reshape(B, S, n_head, d_k).transpose(0, 2, 1, 3)
    w = jnp.einsum("bhqd,bhkd->bhqk", q, k) / math.sqrt(d_k)
    w = jax.nn.softmax(w, axis=-1)
    a = jnp.einsum("bhqk,bhkd->bhqd", w, v).transpose(0, 2, 1, 3).reshape(B, S, D)
    a = lin(a, params["wo"], params["bo"])

    def ln(x, g, b):
        mu = x.mean(-1, keepdims=True)
        var = ((x - mu) ** 2).mean(-1, keepdims=True)
        return (x - mu) * jax.lax.rsqrt(var + eps) * g + b

    x1 = ln(src + a, params["g1"], params["be1"])
    ff = jnp.maximum(lin(x1, params["w1"], params["b1"]), 0.0)
    ff = lin(ff, params["w2"], params["b2"])
    return ln(x1 + ff, params["g2"], params["be2"])


def init_params(key, d_model, n_head, d_ff):
    ks = jax.random.split(key, 16)
    s_d = 1.0 / math.sqrt(d_model)
    s_f = 1.0 / math.sqrt(d_ff)

    def u(k, shape, s):
        return jax.random.uniform(k, shape, jnp.float32, -s, s)

    return {
        "wq": u(ks[0], (d_model, d_model), s_d), "bq": u(ks[6], (1, d_model), s_d),
        "wk": u(ks[1], (d_model, d_model), s_d), "bk": u(ks[7], (1, d_model), s_d),
        "wv": u(ks[2], (d_model, d_model), s_d), "bv": u(ks[8], (1, d_model), s_d),
        "wo": u(ks[3], (d_model, d_model), s_d), "bo": u(ks[9], (1, d_model), s_d),
        "g1": 1.0 + 0.1 * jax.random.normal(ks[10], (1, d_model), jnp.float32),
        "be1": 0.1 * jax.random.normal(ks[11], (1, d_model), jnp.float32),
        "w1": u(ks[4], (d_model, d_ff), s_d), "b1": u(ks[12], (1, d_ff), s_d),
        "w2": u(ks[5], (d_ff, d_model), s_f), "b2": u(ks[13], (1, d_model), s_f),
        "g2": 1.0 + 0.1 * jax.random.normal(ks[14], (1, d_model), jnp.float32),
        "be2": 0.1 * jax.random.normal(ks[15], (1, d_model), jnp.float32),
    }


if __name__ == "__main__":
    B, S, D, H, F = 2, 16, 32, 4, 256
    key = jax.random.PRNGKey(0)
    k_src, k_par = jax.random.split(key)
    src = jax.random.normal(k_src, (B, S, D), jnp.float32)
    params = init_params(k_par, D, H, F)

    ref = _reference(src, params, n_head=H, eps=1e-5)

    # Exact-semantics check: f32 MXU operands (tight tolerance).
    out_f32 = transformer_encoder_layer(
        src, params, n_head=H, eps=1e-5, compute_dtype=jnp.float32)
    out_f32 = jax.block_until_ready(out_f32)
    assert out_f32.shape == (B, S, D)
    assert jnp.allclose(out_f32, ref, atol=1e-4, rtol=1e-4), "f32 mismatch vs reference"

    # Performance configuration: bf16 MXU operands, f32 accumulation (looser tolerance).
    out_bf16 = transformer_encoder_layer(
        src, params, n_head=H, eps=1e-5, compute_dtype=jnp.bfloat16)
    out_bf16 = jax.block_until_ready(out_bf16)
    assert out_bf16.shape == (B, S, D)
    assert jnp.allclose(out_bf16, ref, atol=1e-1, rtol=1e-1), "bf16 mismatch vs reference"

    print("KERNEL_OK")
</pallas_src>

<mosaic_0001>
module attributes {stable_mosaic.version = 11 : i64} {
  func.func @_qkv_kernel(%arg0: i32, %arg1: i32, %arg2: memref<1x16x32xf32, #tpu.memory_space<vmem>>, %arg3: memref<4x32x24xf32, #tpu.memory_space<vmem>>, %arg4: memref<4x1x24xf32, #tpu.memory_space<vmem>>, %arg5: memref<1x4x16x8xf32, #tpu.memory_space<vmem>>, %arg6: memref<1x4x16x8xf32, #tpu.memory_space<vmem>>, %arg7: memref<1x4x16x8xf32, #tpu.memory_space<vmem>>) attributes {dimension_semantics = [#tpu.dimension_semantics<parallel>, #tpu.dimension_semantics<parallel>], iteration_bounds = array<i64: 2, 1>, scalar_prefetch = 0 : i64, scratch_operands = 0 : i64, tpu.core_type = #tpu.core_type<tc>, window_params = [{transform_indices = @transform_0, window_bounds = array<i64: 1, 16, 32>}, {pipeline_mode = #tpu.pipeline_mode<synchronous>, transform_indices = @transform_1, window_bounds = array<i64: 4, 32, 24>}, {pipeline_mode = #tpu.pipeline_mode<synchronous>, transform_indices = @transform_2, window_bounds = array<i64: 4, 1, 24>}, {transform_indices = @transform_3, window_bounds = array<i64: 1, 4, 16, 8>}, {transform_indices = @transform_4, window_bounds = array<i64: 1, 4, 16, 8>}, {transform_indices = @transform_5, window_bounds = array<i64: 1, 4, 16, 8>}]} {
    %c0 = arith.constant 0 : index
    %c0_0 = arith.constant 0 : index
    %c0_1 = arith.constant 0 : index
    %0 = vector.load %arg2[%c0, %c0_0, %c0_1] : memref<1x16x32xf32, #tpu.memory_space<vmem>>, vector<1x16x32xf32>
    %1 = vector.shape_cast %0 : vector<1x16x32xf32> to vector<16x32xf32>
    %c0_2 = arith.constant 0 : index
    %c0_3 = arith.constant 0 : index
    %c0_4 = arith.constant 0 : index
    %2 = vector.load %arg3[%c0_2, %c0_3, %c0_4] : memref<4x32x24xf32, #tpu.memory_space<vmem>>, vector<1x32x24xf32>
    %3 = vector.shape_cast %2 : vector<1x32x24xf32> to vector<32x24xf32>
    %cst = arith.constant dense<0.000000e+00> : vector<16x24xf32>
    %4 = tpu.matmul %1, %3, %cst {dimension_numbers = #tpu.dot_dimension_numbers<[1], [0], [0], [1], [0, 0, 1, 1], [], []>} : vector<16x32xf32>, vector<32x24xf32>, vector<16x24xf32> -> vector<16x24xf32>
    %c0_5 = arith.constant 0 : index
    %c0_6 = arith.constant 0 : index
    %c0_7 = arith.constant 0 : index
    %5 = vector.load %arg4[%c0_5, %c0_6, %c0_7] : memref<4x1x24xf32, #tpu.memory_space<vmem>>, vector<1x1x24xf32>
    %6 = vector.shape_cast %5 : vector<1x1x24xf32> to vector<1x24xf32>
    %7 = vector.broadcast %6 : vector<1x24xf32> to vector<16x24xf32>
    %8 = arith.addf %4, %7 : vector<16x24xf32>
    %9 = vector.extract_strided_slice %8 {offsets = [0, 0], sizes = [16, 8], strides = [1, 1]} : vector<16x24xf32> to vector<16x8xf32>
    %c0_8 = arith.constant 0 : index
    %c0_9 = arith.constant 0 : index
    %c0_10 = arith.constant 0 : index
    %c0_11 = arith.constant 0 : index
    %10 = vector.load %arg5[%c0_8, %c0_9, %c0_10, %c0_11] : memref<1x4x16x8xf32, #tpu.memory_space<vmem>>, vector<1x1x16x8xf32>
    %11 = vector.shape_cast %10 : vector<1x1x16x8xf32> to vector<16x8xf32>
    %12 = vector.shape_cast %9 : vector<16x8xf32> to vector<1x1x16x8xf32>
    tpu.vector_store %arg5[%c0_8, %c0_9, %c0_10, %c0_11], %12 {strides = array<i32>} : memref<1x4x16x8xf32, #tpu.memory_space<vmem>>, vector<1x1x16x8xf32>,
    %13 = vector.extract_strided_slice %8 {offsets = [0, 8], sizes = [16, 8], strides = [1, 1]} : vector<16x24xf32> to vector<16x8xf32>
    %c0_12 = arith.constant 0 : index
    %c0_13 = arith.constant 0 : index
    %c0_14 = arith.constant 0 : index
    %c0_15 = arith.constant 0 : index
    %14 = vector.load %arg6[%c0_12, %c0_13, %c0_14, %c0_15] : memref<1x4x16x8xf32, #tpu.memory_space<vmem>>, vector<1x1x16x8xf32>
    %15 = vector.shape_cast %14 : vector<1x1x16x8xf32> to vector<16x8xf32>
    %16 = vector.shape_cast %13 : vector<16x8xf32> to vector<1x1x16x8xf32>
    tpu.vector_store %arg6[%c0_12, %c0_13, %c0_14, %c0_15], %16 {strides = array<i32>} : memref<1x4x16x8xf32, #tpu.memory_space<vmem>>, vector<1x1x16x8xf32>,
    %17 = vector.extract_strided_slice %8 {offsets = [0, 16], sizes = [16, 8], strides = [1, 1]} : vector<16x24xf32> to vector<16x8xf32>
    %c0_16 = arith.constant 0 : index
    %c0_17 = arith.constant 0 : index
    %c0_18 = arith.constant 0 : index
    %c0_19 = arith.constant 0 : index
    %18 = vector.load %arg7[%c0_16, %c0_17, %c0_18, %c0_19] : memref<1x4x16x8xf32, #tpu.memory_space<vmem>>, vector<1x1x16x8xf32>
    %19 = vector.shape_cast %18 : vector<1x1x16x8xf32> to vector<16x8xf32>
    %20 = vector.shape_cast %17 : vector<16x8xf32> to vector<1x1x16x8xf32>
    tpu.vector_store %arg7[%c0_16, %c0_17, %c0_18, %c0_19], %20 {strides = array<i32>} : memref<1x4x16x8xf32, #tpu.memory_space<vmem>>, vector<1x1x16x8xf32>,
    %c1 = arith.constant 1 : index
    %c0_20 = arith.constant 0 : index
    %c0_21 = arith.constant 0 : index
    %21 = vector.load %arg3[%c1, %c0_20, %c0_21] : memref<4x32x24xf32, #tpu.memory_space<vmem>>, vector<1x32x24xf32>
    %22 = vector.shape_cast %21 : vector<1x32x24xf32> to vector<32x24xf32>
    %cst_22 = arith.constant dense<0.000000e+00> : vector<16x24xf32>
    %23 = tpu.matmul %1, %22, %cst_22 {dimension_numbers = #tpu.dot_dimension_numbers<[1], [0], [0], [1], [0, 0, 1, 1], [], []>} : vector<16x32xf32>, vector<32x24xf32>, vector<16x24xf32> -> vector<16x24xf32>
    %c1_23 = arith.constant 1 : index
    %c0_24 = arith.constant 0 : index
    %c0_25 = arith.constant 0 : index
    %24 = vector.load %arg4[%c1_23, %c0_24, %c0_25] : memref<4x1x24xf32, #tpu.memory_space<vmem>>, vector<1x1x24xf32>
    %25 = vector.shape_cast %24 : vector<1x1x24xf32> to vector<1x24xf32>
    %26 = vector.broadcast %25 : vector<1x24xf32> to vector<16x24xf32>
    %27 = arith.addf %23, %26 : vector<16x24xf32>
    %28 = vector.extract_strided_slice %27 {offsets = [0, 0], sizes = [16, 8], strides = [1, 1]} : vector<16x24xf32> to vector<16x8xf32>
    %c0_26 = arith.constant 0 : index
    %c1_27 = arith.constant 1 : index
    %c0_28 = arith.constant 0 : index
    %c0_29 = arith.constant 0 : index
    %29 = vector.load %arg5[%c0_26, %c1_27, %c0_28, %c0_29] : memref<1x4x16x8xf32, #tpu.memory_space<vmem>>, vector<1x1x16x8xf32>
    %30 = vector.shape_cast %29 : vector<1x1x16x8xf32> to vector<16x8xf32>
    %31 = vector.shape_cast %28 : vector<16x8xf32> to vector<1x1x16x8xf32>
    tpu.vector_store %arg5[%c0_26, %c1_27, %c0_28, %c0_29], %31 {strides = array<i32>} : memref<1x4x16x8xf32, #tpu.memory_space<vmem>>, vector<1x1x16x8xf32>,
    %32 = vector.extract_strided_slice %27 {offsets = [0, 8], sizes = [16, 8], strides = [1, 1]} : vector<16x24xf32> to vector<16x8xf32>
    %c0_30 = arith.constant 0 : index
    %c1_31 = arith.constant 1 : index
    %c0_32 = arith.constant 0 : index
    %c0_33 = arith.constant 0 : index
    %33 = vector.load %arg6[%c0_30, %c1_31, %c0_32, %c0_33] : memref<1x4x16x8xf32, #tpu.memory_space<vmem>>, vector<1x1x16x8xf32>
    %34 = vector.shape_cast %33 : vector<1x1x16x8xf32> to vector<16x8xf32>
    %35 = vector.shape_cast %32 : vector<16x8xf32> to vector<1x1x16x8xf32>
    tpu.vector_store %arg6[%c0_30, %c1_31, %c0_32, %c0_33], %35 {strides = array<i32>} : memref<1x4x16x8xf32, #tpu.memory_space<vmem>>, vector<1x1x16x8xf32>,
    %36 = vector.extract_strided_slice %27 {offsets = [0, 16], sizes = [16, 8], strides = [1, 1]} : vector<16x24xf32> to vector<16x8xf32>
    %c0_34 = arith.constant 0 : index
    %c1_35 = arith.constant 1 : index
    %c0_36 = arith.constant 0 : index
    %c0_37 = arith.constant 0 : index
    %37 = vector.load %arg7[%c0_34, %c1_35, %c0_36, %c0_37] : memref<1x4x16x8xf32, #tpu.memory_space<vmem>>, vector<1x1x16x8xf32>
    %38 = vector.shape_cast %37 : vector<1x1x16x8xf32> to vector<16x8xf32>
    %39 = vector.shape_cast %36 : vector<16x8xf32> to vector<1x1x16x8xf32>
    tpu.vector_store %arg7[%c0_34, %c1_35, %c0_36, %c0_37], %39 {strides = array<i32>} : memref<1x4x16x8xf32, #tpu.memory_space<vmem>>, vector<1x1x16x8xf32>,
    %c2 = arith.constant 2 : index
    %c0_38 = arith.constant 0 : index
    %c0_39 = arith.constant 0 : index
    %40 = vector.load %arg3[%c2, %c0_38, %c0_39] : memref<4x32x24xf32, #tpu.memory_space<vmem>>, vector<1x32x24xf32>
    %41 = vector.shape_cast %40 : vector<1x32x24xf32> to vector<32x24xf32>
    %cst_40 = arith.constant dense<0.000000e+00> : vector<16x24xf32>
    %42 = tpu.matmul %1, %41, %cst_40 {dimension_numbers = #tpu.dot_dimension_numbers<[1], [0], [0], [1], [0, 0, 1, 1], [], []>} : vector<16x32xf32>, vector<32x24xf32>, vector<16x24xf32> -> vector<16x24xf32>
    %c2_41 = arith.constant 2 : index
    %c0_42 = arith.constant 0 : index
    %c0_43 = arith.constant 0 : index
    %43 = vector.load %arg4[%c2_41, %c0_42, %c0_43] : memref<4x1x24xf32, #tpu.memory_space<vmem>>, vector<1x1x24xf32>
    %44 = vector.shape_cast %43 : vector<1x1x24xf32> to vector<1x24xf32>
    %45 = vector.broadcast %44 : vector<1x24xf32> to vector<16x24xf32>
    %46 = arith.addf %42, %45 : vector<16x24xf32>
    %47 = vector.extract_strided_slice %46 {offsets = [0, 0], sizes = [16, 8], strides = [1, 1]} : vector<16x24xf32> to vector<16x8xf32>
    %c0_44 = arith.constant 0 : index
    %c2_45 = arith.constant 2 : index
    %c0_46 = arith.constant 0 : index
    %c0_47 = arith.constant 0 : index
    %48 = vector.load %arg5[%c0_44, %c2_45, %c0_46, %c0_47] : memref<1x4x16x8xf32, #tpu.memory_space<vmem>>, vector<1x1x16x8xf32>
    %49 = vector.shape_cast %48 : vector<1x1x16x8xf32> to vector<16x8xf32>
    %50 = vector.shape_cast %47 : vector<16x8xf32> to vector<1x1x16x8xf32>
    tpu.vector_store %arg5[%c0_44, %c2_45, %c0_46, %c0_47], %50 {strides = array<i32>} : memref<1x4x16x8xf32, #tpu.memory_space<vmem>>, vector<1x1x16x8xf32>,
    %51 = vector.extract_strided_slice %46 {offsets = [0, 8], sizes = [16, 8], strides = [1, 1]} : vector<16x24xf32> to vector<16x8xf32>
    %c0_48 = arith.constant 0 : index
    %c2_49 = arith.constant 2 : index
    %c0_50 = arith.constant 0 : index
    %c0_51 = arith.constant 0 : index
    %52 = vector.load %arg6[%c0_48, %c2_49, %c0_50, %c0_51] : memref<1x4x16x8xf32, #tpu.memory_space<vmem>>, vector<1x1x16x8xf32>
    %53 = vector.shape_cast %52 : vector<1x1x16x8xf32> to vector<16x8xf32>
    %54 = vector.shape_cast %51 : vector<16x8xf32> to vector<1x1x16x8xf32>
    tpu.vector_store %arg6[%c0_48, %c2_49, %c0_50, %c0_51], %54 {strides = array<i32>} : memref<1x4x16x8xf32, #tpu.memory_space<vmem>>, vector<1x1x16x8xf32>,
    %55 = vector.extract_strided_slice %46 {offsets = [0, 16], sizes = [16, 8], strides = [1, 1]} : vector<16x24xf32> to vector<16x8xf32>
    %c0_52 = arith.constant 0 : index
    %c2_53 = arith.constant 2 : index
    %c0_54 = arith.constant 0 : index
    %c0_55 = arith.constant 0 : index
    %56 = vector.load %arg7[%c0_52, %c2_53, %c0_54, %c0_55] : memref<1x4x16x8xf32, #tpu.memory_space<vmem>>, vector<1x1x16x8xf32>
    %57 = vector.shape_cast %56 : vector<1x1x16x8xf32> to vector<16x8xf32>
    %58 = vector.shape_cast %55 : vector<16x8xf32> to vector<1x1x16x8xf32>
    tpu.vector_store %arg7[%c0_52, %c2_53, %c0_54, %c0_55], %58 {strides = array<i32>} : memref<1x4x16x8xf32, #tpu.memory_space<vmem>>, vector<1x1x16x8xf32>,
    %c3 = arith.constant 3 : index
    %c0_56 = arith.constant 0 : index
    %c0_57 = arith.constant 0 : index
    %59 = vector.load %arg3[%c3, %c0_56, %c0_57] : memref<4x32x24xf32, #tpu.memory_space<vmem>>, vector<1x32x24xf32>
    %60 = vector.shape_cast %59 : vector<1x32x24xf32> to vector<32x24xf32>
    %cst_58 = arith.constant dense<0.000000e+00> : vector<16x24xf32>
    %61 = tpu.matmul %1, %60, %cst_58 {dimension_numbers = #tpu.dot_dimension_numbers<[1], [0], [0], [1], [0, 0, 1, 1], [], []>} : vector<16x32xf32>, vector<32x24xf32>, vector<16x24xf32> -> vector<16x24xf32>
    %c3_59 = arith.constant 3 : index
    %c0_60 = arith.constant 0 : index
    %c0_61 = arith.constant 0 : index
    %62 = vector.load %arg4[%c3_59, %c0_60, %c0_61] : memref<4x1x24xf32, #tpu.memory_space<vmem>>, vector<1x1x24xf32>
    %63 = vector.shape_cast %62 : vector<1x1x24xf32> to vector<1x24xf32>
    %64 = vector.broadcast %63 : vector<1x24xf32> to vector<16x24xf32>
    %65 = arith.addf %61, %64 : vector<16x24xf32>
    %66 = vector.extract_strided_slice %65 {offsets = [0, 0], sizes = [16, 8], strides = [1, 1]} : vector<16x24xf32> to vector<16x8xf32>
    %c0_62 = arith.constant 0 : index
    %c3_63 = arith.constant 3 : index
    %c0_64 = arith.constant 0 : index
    %c0_65 = arith.constant 0 : index
    %67 = vector.load %arg5[%c0_62, %c3_63, %c0_64, %c0_65] : memref<1x4x16x8xf32, #tpu.memory_space<vmem>>, vector<1x1x16x8xf32>
    %68 = vector.shape_cast %67 : vector<1x1x16x8xf32> to vector<16x8xf32>
    %69 = vector.shape_cast %66 : vector<16x8xf32> to vector<1x1x16x8xf32>
    tpu.vector_store %arg5[%c0_62, %c3_63, %c0_64, %c0_65], %69 {strides = array<i32>} : memref<1x4x16x8xf32, #tpu.memory_space<vmem>>, vector<1x1x16x8xf32>,
    %70 = vector.extract_strided_slice %65 {offsets = [0, 8], sizes = [16, 8], strides = [1, 1]} : vector<16x24xf32> to vector<16x8xf32>
    %c0_66 = arith.constant 0 : index
    %c3_67 = arith.constant 3 : index
    %c0_68 = arith.constant 0 : index
    %c0_69 = arith.constant 0 : index
    %71 = vector.load %arg6[%c0_66, %c3_67, %c0_68, %c0_69] : memref<1x4x16x8xf32, #tpu.memory_space<vmem>>, vector<1x1x16x8xf32>
    %72 = vector.shape_cast %71 : vector<1x1x16x8xf32> to vector<16x8xf32>
    %73 = vector.shape_cast %70 : vector<16x8xf32> to vector<1x1x16x8xf32>
    tpu.vector_store %arg6[%c0_66, %c3_67, %c0_68, %c0_69], %73 {strides = array<i32>} : memref<1x4x16x8xf32, #tpu.memory_space<vmem>>, vector<1x1x16x8xf32>,
    %74 = vector.extract_strided_slice %65 {offsets = [0, 16], sizes = [16, 8], strides = [1, 1]} : vector<16x24xf32> to vector<16x8xf32>
    %c0_70 = arith.constant 0 : index
    %c3_71 = arith.constant 3 : index
    %c0_72 = arith.constant 0 : index
    %c0_73 = arith.constant 0 : index
    %75 = vector.load %arg7[%c0_70, %c3_71, %c0_72, %c0_73] : memref<1x4x16x8xf32, #tpu.memory_space<vmem>>, vector<1x1x16x8xf32>
    %76 = vector.shape_cast %75 : vector<1x1x16x8xf32> to vector<16x8xf32>
    %77 = vector.shape_cast %74 : vector<16x8xf32> to vector<1x1x16x8xf32>
    tpu.vector_store %arg7[%c0_70, %c3_71, %c0_72, %c0_73], %77 {strides = array<i32>} : memref<1x4x16x8xf32, #tpu.memory_space<vmem>>, vector<1x1x16x8xf32>,
    return
  }
  func.func @transform_0(%arg0: i32, %arg1: i32) -> (i32, i32, i32) {
    %c0_i32 = arith.constant 0 : i32
    %c0_i32_0 = arith.constant 0 : i32
    return %arg0, %arg1, %c0_i32 : i32, i32, i32
  }
  func.func @transform_1(%arg0: i32, %arg1: i32) -> (i32, i32, i32) {
    %c0_i32 = arith.constant 0 : i32
    %c0_i32_0 = arith.constant 0 : i32
    %c0_i32_1 = arith.constant 0 : i32
    %c0_i32_2 = arith.constant 0 : i32
    return %c0_i32, %c0_i32_0, %c0_i32_1 : i32, i32, i32
  }
  func.func @transform_2(%arg0: i32, %arg1: i32) -> (i32, i32, i32) {
    %c0_i32 = arith.constant 0 : i32
    %c0_i32_0 = arith.constant 0 : i32
    %c0_i32_1 = arith.constant 0 : i32
    %c0_i32_2 = arith.constant 0 : i32
    return %c0_i32, %c0_i32_0, %c0_i32_1 : i32, i32, i32
  }
  func.func @transform_3(%arg0: i32, %arg1: i32) -> (i32, i32, i32, i32) {
    %c0_i32 = arith.constant 0 : i32
    %c0_i32_0 = arith.constant 0 : i32
    %c0_i32_1 = arith.constant 0 : i32
    return %arg0, %c0_i32, %arg1, %c0_i32_0 : i32, i32, i32, i32
  }
  func.func @transform_4(%arg0: i32, %arg1: i32) -> (i32, i32, i32, i32) {
    %c0_i32 = arith.constant 0 : i32
    %c0_i32_0 = arith.constant 0 : i32
    %c0_i32_1 = arith.constant 0 : i32
    return %arg0, %c0_i32, %arg1, %c0_i32_0 : i32, i32, i32, i32
  }
  func.func @transform_5(%arg0: i32, %arg1: i32) -> (i32, i32, i32, i32) {
    %c0_i32 = arith.constant 0 : i32
    %c0_i32_0 = arith.constant 0 : i32
    %c0_i32_1 = arith.constant 0 : i32
    return %arg0, %c0_i32, %arg1, %c0_i32_0 : i32, i32, i32, i32
  }
}

</mosaic_0001>

<llo_original>
// kernel: tpu_custom_call.1
$region0: #{tpu_custom_call.1}
  #allocation0 [shape = 'u32[]', space=smem, size = 0x4, offset = 0x4, fixed_abs, tag = 'smem constant byte address 0x4 - core index']
  #allocation1 [shape = 'u32[72,128]{1,0:T(1,128)}', space=vmem, size = 0x9000, scoped, tag = 'internal scratch']
  %s0 = inlined_call_operand.vmem [shape: f32[2,16,32], index: 0, kind: input, shape index: {}]
  %s1 = inlined_call_operand.vmem [shape: f32[4,32,24], index: 1, kind: input, shape index: {}]
  %s2 = inlined_call_operand.vmem [shape: f32[4,1,24], index: 2, kind: input, shape index: {}]
  %s3 = inlined_call_operand.vmem [shape: f32[2,4,16,8], index: 3, kind: output, shape index: {0}]
  %s4 = inlined_call_operand.vmem [shape: f32[2,4,16,8], index: 4, kind: output, shape index: {1}]
  %s5 = inlined_call_operand.vmem [shape: f32[2,4,16,8], index: 5, kind: output, shape index: {2}]
  %6 = xla_tuple %s3, %s4, %s5
  %s7 = sld [smem:[#allocation0]]
  $region61: #{tpu_custom_call.1} parent=0
    _
  %s9 = ssub.s32 1, %s7
  %s10 = scalar_select 0, %s9, %s7
  loop: start=0, step=1, limit=4
  $region2: #{tpu_custom_call.1} parent=0 // loop_pre_header
    _
  $region3: #{tpu_custom_call.1} parent=0 // loop_header
    %s12 = sphi 0, %s16
    %p13 = scmp.ge.s32.totalorder %s12, 4
    %s19 = sphi 0, %s31
    %s20 = sphi 0, %s27
    %s21 = sphi 0, %s19
    %s22 = sphi 0, %s20
    %s23 = sphi 0, %s21
    %s24 = sphi 0, %s22
    %s36 = sphi 0, %s38
    %s39 = sphi 0, %s36
    %s40 = sphi 0, %s39
    %s56 = sphi 0, %s40
    %s60 = sphi 0, %s60
    %s62 = sphi 0, %s60
    %s63 = sphi 0, %s62
    %s77 = sphi 0, %s63
    %s81 = sphi 0, %s81
    %s83 = sphi 0, %s81
    %s84 = sphi 0, %s83
    %s98 = sphi 0, %s84
    %s106 = sphi 0, %s108
    %s109 = sphi 0, %s106
    %s110 = sphi 0, %s109
    %s126 = sphi 0, %s110
    %s134 = sphi 0, %s136
    %s137 = sphi 0, %s134
    %s138 = sphi 0, %s137
    %s154 = sphi 0, %s138
    %s162 = sphi 0, %s164
    %s165 = sphi 0, %s162
    %s166 = sphi 0, %s165
    %s182 = sphi 0, %s166
  $region4: #{tpu_custom_call.1} parent=0 // loop_header_branch
    %15 = sbr.rel (%p13) target = $region8
  $region5: #{tpu_custom_call.1} parent=0 // loop_body
    %s17 = ssub.s32 %s12, 1
    %s18 = ssub.s32 %s12, 2
    %s25 = sadd.s32 1, %s20
    %p26 = scmp.ge.s32.totalorder %s25, 1
    %s27 = scalar_select %p26, 0, %s25
    %s28 = sadd.s32 1, %s19
    %s29 = scalar_select %p26, %s28, %s19
    %p30 = scmp.ge.s32.totalorder %s29, 2
    %s31 = scalar_select %p30, 0, %s29
    %s32 = ssub.s32 %s19, %s31
    %s33 = ssub.s32 %s20, %s27
    %s34 = sor.u32 %s32, %s33
    %p35 = scmp.eq.s32.totalorder %s34, 0
    %s37 = sadd.s32 %s36, 1
    %s38 = scalar_select %p35, %s36, %s37
    %p41 = pneg %p35
    %p42 = scmp.eq.s32.totalorder %s12, 1
    %p43 = por %p41, %p42
    %p44 = scmp.ne.s32.totalorder %s36, %s39
    %p45 = scmp.eq.s32.totalorder %s12, 0
    %p46 = por %p44, %p45
    %p47 = scmp.ne.s32.totalorder %s36, %s39
    %p48 = scmp.eq.s32.totalorder %s17, 1
    %p49 = por %p47, %p48
    %p50 = scmp.ne.s32.totalorder %s39, %s40
    %p51 = scmp.eq.s32.totalorder %s17, 0
    %p52 = por %p50, %p51
    %p53 = scmp.ne.s32.totalorder %s39, %s40
    %p54 = scmp.eq.s32.totalorder %s18, 1
    %p55 = por %p53, %p54
    %p57 = scmp.ne.s32.totalorder %s40, %s56
    %p58 = scmp.eq.s32.totalorder %s18, 0
    %p59 = por %p57, %p58
    %s61 = sadd.s32 %s60, 1
    %p64 = scmp.eq.s32.totalorder %s12, 1
    %p65 = scmp.ne.s32.totalorder %s60, %s62
    %p66 = scmp.eq.s32.totalorder %s12, 0
    %p67 = por %p65, %p66
    %p68 = scmp.ne.s32.totalorder %s60, %s62
    %p69 = scmp.eq.s32.totalorder %s17, 1
    %p70 = por %p68, %p69
    %p71 = scmp.ne.s32.totalorder %s62, %s63
    %p72 = scmp.eq.s32.totalorder %s17, 0
    %p73 = por %p71, %p72
    %p74 = scmp.ne.s32.totalorder %s62, %s63
    %p75 = scmp.eq.s32.totalorder %s18, 1
    %p76 = por %p74, %p75
    %p78 = scmp.ne.s32.totalorder %s63, %s77
    %p79 = scmp.eq.s32.totalorder %s18, 0
    %p80 = por %p78, %p79
    %s82 = sadd.s32 %s81, 1
    %p85 = scmp.eq.s32.totalorder %s12, 1
    %p86 = scmp.ne.s32.totalorder %s81, %s83
    %p87 = scmp.eq.s32.totalorder %s12, 0
    %p88 = por %p86, %p87
    %p89 = scmp.ne.s32.totalorder %s81, %s83
    %p90 = scmp.eq.s32.totalorder %s17, 1
    %p91 = por %p89, %p90
    %p92 = scmp.ne.s32.totalorder %s83, %s84
    %p93 = scmp.eq.s32.totalorder %s17, 0
    %p94 = por %p92, %p93
    %p95 = scmp.ne.s32.totalorder %s83, %s84
    %p96 = scmp.eq.s32.totalorder %s18, 1
    %p97 = por %p95, %p96
    %p99 = scmp.ne.s32.totalorder %s84, %s98
    %p100 = scmp.eq.s32.totalorder %s18, 0
    %p101 = por %p99, %p100
    %s102 = ssub.s32 %s19, %s31
    %s103 = ssub.s32 %s20, %s27
    %s104 = sor.u32 %s102, %s103
    %p105 = scmp.eq.s32.totalorder %s104, 0
    %s107 = sadd.s32 %s106, 1
    %s108 = scalar_select %p105, %s106, %s107
    %p111 = pneg %p105
    %p112 = scmp.eq.s32.totalorder %s12, 1
    %p113 = por %p111, %p112
    %p114 = scmp.ne.s32.totalorder %s106, %s109
    %p115 = scmp.eq.s32.totalorder %s12, 0
    %p116 = por %p114, %p115
    %p117 = scmp.ne.s32.totalorder %s106, %s109
    %p118 = scmp.eq.s32.totalorder %s17, 1
    %p119 = por %p117, %p118
    %p120 = scmp.ne.s32.totalorder %s109, %s110
    %p121 = scmp.eq.s32.totalorder %s17, 0
    %p122 = por %p120, %p121
    %p123 = scmp.ne.s32.totalorder %s109, %s110
    %p124 = scmp.eq.s32.totalorder %s18, 1
    %p125 = por %p123, %p124
    %p127 = scmp.ne.s32.totalorder %s110, %s126
    %p128 = scmp.eq.s32.totalorder %s18, 0
    %p129 = por %p127, %p128
    %s130 = ssub.s32 %s19, %s31
    %s131 = ssub.s32 %s20, %s27
    %s132 = sor.u32 %s130, %s131
    %p133 = scmp.eq.s32.totalorder %s132, 0
    %s135 = sadd.s32 %s134, 1
    %s136 = scalar_select %p133, %s134, %s135
    %p139 = pneg %p133
    %p140 = scmp.eq.s32.totalorder %s12, 1
    %p141 = por %p139, %p140
    %p142 = scmp.ne.s32.totalorder %s134, %s137
    %p143 = scmp.eq.s32.totalorder %s12, 0
    %p144 = por %p142, %p143
    %p145 = scmp.ne.s32.totalorder %s134, %s137
    %p146 = scmp.eq.s32.totalorder %s17, 1
    %p147 = por %p145, %p146
    %p148 = scmp.ne.s32.totalorder %s137, %s138
    %p149 = scmp.eq.s32.totalorder %s17, 0
    %p150 = por %p148, %p149
    %p151 = scmp.ne.s32.totalorder %s137, %s138
    %p152 = scmp.eq.s32.totalorder %s18, 1
    %p153 = por %p151, %p152
    %p155 = scmp.ne.s32.totalorder %s138, %s154
    %p156 = scmp.eq.s32.totalorder %s18, 0
    %p157 = por %p155, %p156
    %s158 = ssub.s32 %s19, %s31
    %s159 = ssub.s32 %s20, %s27
    %s160 = sor.u32 %s158, %s159
    %p161 = scmp.eq.s32.totalorder %s160, 0
    %s163 = sadd.s32 %s162, 1
    %s164 = scalar_select %p161, %s162, %s163
    %p167 = pneg %p161
    %p168 = scmp.eq.s32.totalorder %s12, 1
    %p169 = por %p167, %p168
    %p170 = scmp.ne.s32.totalorder %s162, %s165
    %p171 = scmp.eq.s32.totalorder %s12, 0
    %p172 = por %p170, %p171
    %p173 = scmp.ne.s32.totalorder %s162, %s165
    %p174 = scmp.eq.s32.totalorder %s17, 1
    %p175 = por %p173, %p174
    %p176 = scmp.ne.s32.totalorder %s165, %s166
    %p177 = scmp.eq.s32.totalorder %s17, 0
    %p178 = por %p176, %p177
    %p179 = scmp.ne.s32.totalorder %s165, %s166
    %p180 = scmp.eq.s32.totalorder %s18, 1
    %p181 = por %p179, %p180
    %p183 = scmp.ne.s32.totalorder %s166, %s182
    %p184 = scmp.eq.s32.totalorder %s18, 0
    %p185 = por %p183, %p184
    %p186 = scmp.le.s32.totalorder 1, %s12
    %p187 = scmp.lt.s32.totalorder %s12, 3
    %p188 = pnand %p186, %p187
    %p189 = pneg %p188
    // Predicated region
    $region9: #{tpu_custom_call.1} parent=5 // pred_check
      _
    $region10: #{tpu_custom_call.1} parent=5 // pred_check_branch
      %191 = sbr.rel (%p188) target = $region12
    $region11: #{tpu_custom_call.1} parent=5 // pred_region
      %s192 = ssub.s32 %s12, 1
      // Predicated region
      $region13: #{tpu_custom_call.1} parent=11 // pred_check
        %p193 = pneg %p73
      $region14: #{tpu_custom_call.1} parent=11 // pred_check_branch
        %195 = sbr.rel (%p193) target = $region16
      $region15: #{tpu_custom_call.1} parent=11 // pred_region
        _
      $region16: #{tpu_custom_call.1} parent=11 // pred_fallthru
        _
      // Predicated region
      $region17: #{tpu_custom_call.1} parent=11 // pred_check
        %p196 = pneg %p94
      $region18: #{tpu_custom_call.1} parent=11 // pred_check_branch
        %198 = sbr.rel (%p196) target = $region20
      $region19: #{tpu_custom_call.1} parent=11 // pred_region
        _
      $region20: #{tpu_custom_call.1} parent=11 // pred_fallthru
        _
    $region12: #{tpu_custom_call.1} parent=5 // pred_fallthru
      _
    %p199 = scmp.lt.s32.totalorder %s12, 2
    // Predicated region
    $region21: #{tpu_custom_call.1} parent=5 // pred_check
      %p200 = pneg %p199
    $region22: #{tpu_custom_call.1} parent=5 // pred_check_branch
      %202 = sbr.rel (%p200) target = $region24
    $region23: #{tpu_custom_call.1} parent=5 // pred_region
      // Predicated region
      $region25: #{tpu_custom_call.1} parent=23 // pred_check
        %p203 = pneg %p46
      $region26: #{tpu_custom_call.1} parent=23 // pred_check_branch
        %205 = sbr.rel (%p203) target = $region28
      $region27: #{tpu_custom_call.1} parent=23 // pred_region
        %s206 = smul.u32 2, %s20
        %p207 = scmp.lt.s32.totalorder %s19, 1
        %s208 = scalar_select %p207, %s19, 1
        %p209 = scmp.lt.s32.totalorder %s206, 1
        %s210 = scalar_select %p209, %s206, 1
        %s211 = smul.addr %s208, 2
        %s212 = sadd.s32 %s210, %s211
        %s213 = smul.addr %s212, 8
        %s214 = scalar_lea.vmem %s0, %s213
        %s215 = smul.u32 2, %s20
      $region28: #{tpu_custom_call.1} parent=23 // pred_fallthru
        _
    $region24: #{tpu_custom_call.1} parent=5 // pred_fallthru
      _
    %p216 = scmp.le.s32.totalorder 1, %s12
    %p217 = scmp.lt.s32.totalorder %s12, 3
    %p218 = pnand %p216, %p217
    %p219 = pneg %p218
    // Predicated region
    $region29: #{tpu_custom_call.1} parent=5 // pred_check
      _
    $region30: #{tpu_custom_call.1} parent=5 // pred_check_branch
      %221 = sbr.rel (%p218) target = $region32
    $region31: #{tpu_custom_call.1} parent=5 // pred_region
      %s222 = ssub.s32 %s12, 1
      %s223 = smul.u32 2, %s22
      %p224 = scmp.lt.s32.totalorder %s21, 1
      %s225 = scalar_select %p224, %s21, 1
      %p226 = scmp.lt.s32.totalorder %s223, 1
      %s227 = scalar_select %p226, %s223, 1
      %s228 = smul.addr %s225, 2
      %s229 = sadd.s32 %s227, %s228
      %s230 = smul.addr %s229, 8
      %s231 = scalar_lea.vmem %s0, %s230
      %p232 = pneg %p52
      %p233 = pneg %p49
      %p234 = pneg %p73
      %p235 = pneg %p70
      %p236 = pneg %p94
      %p237 = pneg %p91
      %p238 = pneg %p122
      %p239 = pneg %p119
      %s240 = smul.u32 2, %s22
      %p241 = scmp.lt.s32.totalorder %s21, 1
      %s242 = scalar_select %p241, %s21, 1
      %p243 = scmp.lt.s32.totalorder %s240, 1
      %s244 = scalar_select %p243, %s240, 1
      %s245 = smul.addr %s242, 8
      %s246 = sadd.s32 %s244, %s245
      %s247 = smul.addr %s246, 8
      %s248 = scalar_lea.vmem %s3, %s247
      %p249 = pneg %p150
      %p250 = pneg %p147
      %s251 = smul.u32 2, %s22
      %p252 = scmp.lt.s32.totalorder %s21, 1
      %s253 = scalar_select %p252, %s21, 1
      %p254 = scmp.lt.s32.totalorder %s251, 1
      %s255 = scalar_select %p254, %s251, 1
      %s256 = smul.addr %s253, 8
      %s257 = sadd.s32 %s255, %s256
      %s258 = smul.addr %s257, 8
      %s259 = scalar_lea.vmem %s4, %s258
      %p260 = pneg %p178
      %p261 = pneg %p175
      %s262 = smul.u32 2, %s22
      %p263 = scmp.lt.s32.totalorder %s21, 1
      %s264 = scalar_select %p263, %s21, 1
      %p265 = scmp.lt.s32.totalorder %s262, 1
      %s266 = scalar_select %p265, %s262, 1
      %s267 = smul.addr %s264, 8
      %s268 = sadd.s32 %s266, %s267
      %s269 = smul.addr %s268, 8
      %s270 = scalar_lea.vmem %s5, %s269
      %s271 = smul.u32 2, %s22
      %p272 = scmp.lt.s32.totalorder %s21, 1
      %s273 = scalar_select %p272, %s21, 1
      %p274 = scmp.lt.s32.totalorder %s271, 1
      %s275 = scalar_select %p274, %s271, 1
      %s276 = smul.addr %s273, 2
      %s277 = sadd.s32 %s275, %s276
      %s278 = smul.addr %s277, 8
      %s279 = scalar_lea.vmem %s0, %s278
      %s280 = smul.u32 2, %s22
      %s281 = smul.u32 2, %s22
      %p282 = scmp.lt.s32.totalorder %s21, 1
      %s283 = scalar_select %p282, %s21, 1
      %p284 = scmp.lt.s32.totalorder %s281, 1
      %s285 = scalar_select %p284, %s281, 1
      %s286 = smul.addr %s283, 8
      %s287 = sadd.s32 %s285, %s286
      %s288 = smul.addr %s287, 8
      %s289 = scalar_lea.vmem %s3, %s288
      %s290 = smul.u32 2, %s22
      %s291 = smul.u32 2, %s22
      %p292 = scmp.lt.s32.totalorder %s21, 1
      %s293 = scalar_select %p292, %s21, 1
      %p294 = scmp.lt.s32.totalorder %s291, 1
      %s295 = scalar_select %p294, %s291, 1
      %s296 = smul.addr %s293, 8
      %s297 = sadd.s32 %s295, %s296
      %s298 = smul.addr %s297, 8
      %s299 = scalar_lea.vmem %s4, %s298
      %s300 = smul.u32 2, %s22
      %s301 = smul.u32 2, %s22
      %p302 = scmp.lt.s32.totalorder %s21, 1
      %s303 = scalar_select %p302, %s21, 1
      %p304 = scmp.lt.s32.totalorder %s301, 1
      %s305 = scalar_select %p304, %s301, 1
      %s306 = smul.addr %s303, 8
      %s307 = sadd.s32 %s305, %s306
      %s308 = smul.addr %s307, 8
      %s309 = scalar_lea.vmem %s5, %s308
      %s310 = smul.u32 2, %s22
      %v311 = vld [vmem:[%s279] sm:$0xff]
      %v312 = vld [vmem:[%s279 + $0x8] sm:$0xff]
      %v313 = vld [vmem:[%s1] sm:$0xff]
      %v314 = vld [vmem:[%s1 + $0x8] sm:$0xff]
      %v315 = vld [vmem:[%s1 + $0x10] sm:$0xff]
      %v316 = vld [vmem:[%s1 + $0x18] sm:$0xff]
      %v317 = vld [vmem:[%s2] sm:$0x1]
      %v319 = vperm.slane %v317, 0
      %vm321 = vcmask 261120
      %v323 = vsel %vm321, %v311, 0
      %v326 = vsel %vm321, %v312, 0
      %328 = vmatpush.msra.mxu0 0.0
      %329 = vmatpush.msra.mxu0 0.0
      %330 = vmatpush.msra.mxu0 0.0
      %331 = vmatpush.msra.mxu0 0.0
      %332 = vmatpush.msra.mxu0 0.0
      %333 = vmatpush.msra.mxu0 0.0
      %334 = vmatpush.msra.mxu0 0.0
      %335 = vmatpush.msra.mxu0 0.0
      %336 = vmatpush.msra.mxu0 0.0
      %337 = vmatpush.msra.mxu0 0.0
      %338 = vmatpush.msra.mxu0 0.0
      %339 = vmatpush.msra.mxu0 0.0
      %340 = vmatpush.msra.mxu0 %v316
      %341 = vmatpush.msra.mxu0 %v315
      %342 = vmatpush.msra.mxu0 %v314
      %343 = vmatpush.msra.mxu0 %v313
      %344 = vmatmul.f32.gmra.mxu0 %v323
      %v345 = vpop.f32.mrf.mxu0
      %v346 = vadd.f32 %v319, %v345
      %347 = vmatmul.f32.gmra.mxu0 %v326
      %v348 = vpop.f32.mrf.mxu0
      %v349 = vadd.f32 %v319, %v348
      %350 = vdwg.mxu0
      %vm351 = vcmask 64512
      %352 = vst.msk [vmem:[%s289] sm:$0xff] %vm351, %v346
      %353 = vst.msk [vmem:[%s289 + $0x8] sm:$0xff] %vm351, %v349
      %356 = vrot.lane.b32.xlu0 %v346, 120
      %v357 = vpop.permute.xlu0 %356
      %358 = vrot.lane.b32.xlu0 %v349, 120
      %v359 = vpop.permute.xlu0 %358
      %362 = vst.msk [vmem:[%s299] sm:$0xff] %vm351, %v357
      %363 = vst.msk [vmem:[%s299 + $0x8] sm:$0xff] %vm351, %v359
      %364 = vrot.lane.b32.xlu0 %v346, 112
      %v365 = vpop.permute.xlu0 %364
      %366 = vrot.lane.b32.xlu0 %v349, 112
      %v367 = vpop.permute.xlu0 %366
      %370 = vst.msk [vmem:[%s309] sm:$0xff] %vm351, %v365
      %371 = vst.msk [vmem:[%s309 + $0x8] sm:$0xff] %vm351, %v367
      %s372 = scalar_lea.vmem %s1, 32
      %v373 = vld [vmem:[%s372] sm:$0xff]
      %v374 = vld [vmem:[%s372 + $0x8] sm:$0xff]
      %v375 = vld [vmem:[%s372 + $0x10] sm:$0xff]
      %v376 = vld [vmem:[%s372 + $0x18] sm:$0xff]
      %s377 = scalar_lea.vmem %s2, 1
      %v378 = vld [vmem:[%s377] sm:$0x1]
      %v380 = vperm.slane %v378, 0
      %382 = vmatpush.msra.mxu0 0.0
      %383 = vmatpush.msra.mxu0 0.0
      %384 = vmatpush.msra.mxu0 0.0
      %385 = vmatpush.msra.mxu0 0.0
      %386 = vmatpush.msra.mxu0 0.0
      %387 = vmatpush.msra.mxu0 0.0
      %388 = vmatpush.msra.mxu0 0.0
      %389 = vmatpush.msra.mxu0 0.0
      %390 = vmatpush.msra.mxu0 0.0
      %391 = vmatpush.msra.mxu0 0.0
      %392 = vmatpush.msra.mxu0 0.0
      %393 = vmatpush.msra.mxu0 0.0
      %394 = vmatpush.msra.mxu0 %v376
      %395 = vmatpush.msra.mxu0 %v375
      %396 = vmatpush.msra.mxu0 %v374
      %397 = vmatpush.msra.mxu0 %v373
      %398 = vmatmul.f32.gmra.mxu0 %v323
      %v399 = vpop.f32.mrf.mxu0
      %v400 = vadd.f32 %v380, %v399
      %401 = vmatmul.f32.gmra.mxu0 %v326
      %v402 = vpop.f32.mrf.mxu0
      %v403 = vadd.f32 %v380, %v402
      %404 = vdwg.mxu0
      %s405 = scalar_lea.vmem %s289, 16
      %406 = vst.msk [vmem:[%s405] sm:$0xff] %vm351, %v400
      %407 = vst.msk [vmem:[%s405 + $0x8] sm:$0xff] %vm351, %v403
      %410 = vrot.lane.b32.xlu0 %v400, 120
      %v411 = vpop.permute.xlu0 %410
      %412 = vrot.lane.b32.xlu0 %v403, 120
      %v413 = vpop.permute.xlu0 %412
      %s416 = scalar_lea.vmem %s299, 16
      %417 = vst.msk [vmem:[%s416] sm:$0xff] %vm351, %v411
      %418 = vst.msk [vmem:[%s416 + $0x8] sm:$0xff] %vm351, %v413
      %419 = vrot.lane.b32.xlu0 %v400, 112
      %v420 = vpop.permute.xlu0 %419
      %421 = vrot.lane.b32.xlu0 %v403, 112
      %v422 = vpop.permute.xlu0 %421
      %s425 = scalar_lea.vmem %s309, 16
      %426 = vst.msk [vmem:[%s425] sm:$0xff] %vm351, %v420
      %427 = vst.msk [vmem:[%s425 + $0x8] sm:$0xff] %vm351, %v422
      %s428 = scalar_lea.vmem %s1, 64
      %v429 = vld [vmem:[%s428] sm:$0xff]
      %v430 = vld [vmem:[%s428 + $0x8] sm:$0xff]
      %v431 = vld [vmem:[%s428 + $0x10] sm:$0xff]
      %v432 = vld [vmem:[%s428 + $0x18] sm:$0xff]
      %s433 = scalar_lea.vmem %s2, 2
      %v434 = vld [vmem:[%s433] sm:$0x1]
      %v436 = vperm.slane %v434, 0
      %438 = vmatpush.msra.mxu0 0.0
      %439 = vmatpush.msra.mxu0 0.0
      %440 = vmatpush.msra.mxu0 0.0
      %441 = vmatpush.msra.mxu0 0.0
      %442 = vmatpush.msra.mxu0 0.0
      %443 = vmatpush.msra.mxu0 0.0
      %444 = vmatpush.msra.mxu0 0.0
      %445 = vmatpush.msra.mxu0 0.0
      %446 = vmatpush.msra.mxu0 0.0
      %447 = vmatpush.msra.mxu0 0.0
      %448 = vmatpush.msra.mxu0 0.0
      %449 = vmatpush.msra.mxu0 0.0
      %450 = vmatpush.msra.mxu0 %v432
      %451 = vmatpush.msra.mxu0 %v431
      %452 = vmatpush.msra.mxu0 %v430
      %453 = vmatpush.msra.mxu0 %v429
      %454 = vmatmul.f32.gmra.mxu0 %v323
      %v455 = vpop.f32.mrf.mxu0
      %v456 = vadd.f32 %v436, %v455
      %457 = vmatmul.f32.gmra.mxu0 %v326
      %v458 = vpop.f32.mrf.mxu0
      %v459 = vadd.f32 %v436, %v458
      %460 = vdwg.mxu0
      %s461 = scalar_lea.vmem %s289, 32
      %462 = vst.msk [vmem:[%s461] sm:$0xff] %vm351, %v456
      %463 = vst.msk [vmem:[%s461 + $0x8] sm:$0xff] %vm351, %v459
      %466 = vrot.lane.b32.xlu0 %v456, 120
      %v467 = vpop.permute.xlu0 %466
      %468 = vrot.lane.b32.xlu0 %v459, 120
      %v469 = vpop.permute.xlu0 %468
      %s472 = scalar_lea.vmem %s299, 32
      %473 = vst.msk [vmem:[%s472] sm:$0xff] %vm351, %v467
      %474 = vst.msk [vmem:[%s472 + $0x8] sm:$0xff] %vm351, %v469
      %475 = vrot.lane.b32.xlu0 %v456, 112
      %v476 = vpop.permute.xlu0 %475
      %477 = vrot.lane.b32.xlu0 %v459, 112
      %v478 = vpop.permute.xlu0 %477
      %s481 = scalar_lea.vmem %s309, 32
      %482 = vst.msk [vmem:[%s481] sm:$0xff] %vm351, %v476
      %483 = vst.msk [vmem:[%s481 + $0x8] sm:$0xff] %vm351, %v478
      %s484 = scalar_lea.vmem %s1, 96
      %v485 = vld [vmem:[%s484] sm:$0xff]
      %v486 = vld [vmem:[%s484 + $0x8] sm:$0xff]
      %v487 = vld [vmem:[%s484 + $0x10] sm:$0xff]
      %v488 = vld [vmem:[%s484 + $0x18] sm:$0xff]
      %s489 = scalar_lea.vmem %s2, 3
      %v490 = vld [vmem:[%s489] sm:$0x1]
      %v492 = vperm.slane %v490, 0
      %494 = vmatpush.msra.mxu0 0.0
      %495 = vmatpush.msra.mxu0 0.0
      %496 = vmatpush.msra.mxu0 0.0
      %497 = vmatpush.msra.mxu0 0.0
      %498 = vmatpush.msra.mxu0 0.0
      %499 = vmatpush.msra.mxu0 0.0
      %500 = vmatpush.msra.mxu0 0.0
      %501 = vmatpush.msra.mxu0 0.0
      %502 = vmatpush.msra.mxu0 0.0
      %503 = vmatpush.msra.mxu0 0.0
      %504 = vmatpush.msra.mxu0 0.0
      %505 = vmatpush.msra.mxu0 0.0
      %506 = vmatpush.msra.mxu0 %v488
      %507 = vmatpush.msra.mxu0 %v487
      %508 = vmatpush.msra.mxu0 %v486
      %509 = vmatpush.msra.mxu0 %v485
      %510 = vmatmul.f32.gmra.mxu0 %v323
      %v511 = vpop.f32.mrf.mxu0
      %v512 = vadd.f32 %v492, %v511
      %513 = vmatmul.f32.gmra.mxu0 %v326
      %v514 = vpop.f32.mrf.mxu0
      %v515 = vadd.f32 %v492, %v514
      %516 = vdwg.mxu0
      %s517 = scalar_lea.vmem %s289, 48
      %518 = vst.msk [vmem:[%s517] sm:$0xff] %vm351, %v512
      %519 = vst.msk [vmem:[%s517 + $0x8] sm:$0xff] %vm351, %v515
      %522 = vrot.lane.b32.xlu0 %v512, 120
      %v523 = vpop.permute.xlu0 %522
      %524 = vrot.lane.b32.xlu0 %v515, 120
      %v525 = vpop.permute.xlu0 %524
      %s528 = scalar_lea.vmem %s299, 48
      %529 = vst.msk [vmem:[%s528] sm:$0xff] %vm351, %v523
      %530 = vst.msk [vmem:[%s528 + $0x8] sm:$0xff] %vm351, %v525
      %531 = vrot.lane.b32.xlu0 %v512, 112
      %v532 = vpop.permute.xlu0 %531
      %533 = vrot.lane.b32.xlu0 %v515, 112
      %v534 = vpop.permute.xlu0 %533
      %s537 = scalar_lea.vmem %s309, 48
      %538 = vst.msk [vmem:[%s537] sm:$0xff] %vm351, %v532
      %539 = vst.msk [vmem:[%s537 + $0x8] sm:$0xff] %vm351, %v534
      %s540 = smul.u32 2, %s22
      %p541 = scmp.lt.s32.totalorder %s21, 1
      %s542 = scalar_select %p541, %s21, 1
      %p543 = scmp.lt.s32.totalorder %s540, 1
      %s544 = scalar_select %p543, %s540, 1
      %s545 = smul.addr %s542, 8
      %s546 = sadd.s32 %s544, %s545
      %s547 = smul.addr %s546, 8
      %s548 = scalar_lea.vmem %s3, %s547
      %s549 = smul.u32 2, %s22
      %p550 = scmp.lt.s32.totalorder %s21, 1
      %s551 = scalar_select %p550, %s21, 1
      %p552 = scmp.lt.s32.totalorder %s549, 1
      %s553 = scalar_select %p552, %s549, 1
      %s554 = smul.addr %s551, 8
      %s555 = sadd.s32 %s553, %s554
      %s556 = smul.addr %s555, 8
      %s557 = scalar_lea.vmem %s4, %s556
      %s558 = smul.u32 2, %s22
      %p559 = scmp.lt.s32.totalorder %s21, 1
      %s560 = scalar_select %p559, %s21, 1
      %p561 = scmp.lt.s32.totalorder %s558, 1
      %s562 = scalar_select %p561, %s558, 1
      %s563 = smul.addr %s560, 8
      %s564 = sadd.s32 %s562, %s563
      %s565 = smul.addr %s564, 8
      %s566 = scalar_lea.vmem %s5, %s565
      // Predicated region
      $region33: #{tpu_custom_call.1} parent=31 // pred_check
        %p567 = pneg %p119
      $region34: #{tpu_custom_call.1} parent=31 // pred_check_branch
        %569 = sbr.rel (%p567) target = $region36
      $region35: #{tpu_custom_call.1} parent=31 // pred_region
        %s570 = smul.u32 2, %s22
      $region36: #{tpu_custom_call.1} parent=31 // pred_fallthru
        _
      // Predicated region
      $region37: #{tpu_custom_call.1} parent=31 // pred_check
        %p571 = pneg %p147
      $region38: #{tpu_custom_call.1} parent=31 // pred_check_branch
        %573 = sbr.rel (%p571) target = $region40
      $region39: #{tpu_custom_call.1} parent=31 // pred_region
        %s574 = smul.u32 2, %s22
      $region40: #{tpu_custom_call.1} parent=31 // pred_fallthru
        _
      // Predicated region
      $region41: #{tpu_custom_call.1} parent=31 // pred_check
        %p575 = pneg %p175
      $region42: #{tpu_custom_call.1} parent=31 // pred_check_branch
        %577 = sbr.rel (%p575) target = $region44
      $region43: #{tpu_custom_call.1} parent=31 // pred_region
        %s578 = smul.u32 2, %s22
      $region44: #{tpu_custom_call.1} parent=31 // pred_fallthru
        _
    $region32: #{tpu_custom_call.1} parent=5 // pred_fallthru
      _
    %p579 = scmp.le.s32.totalorder 2, %s12
    // Predicated region
    $region45: #{tpu_custom_call.1} parent=5 // pred_check
      %p580 = pneg %p579
    $region46: #{tpu_custom_call.1} parent=5 // pred_check_branch
      %582 = sbr.rel (%p580) target = $region48
    $region47: #{tpu_custom_call.1} parent=5 // pred_region
      %s583 = ssub.s32 %s12, 2
      // Predicated region
      $region49: #{tpu_custom_call.1} parent=47 // pred_check
        %p584 = pneg %p125
      $region50: #{tpu_custom_call.1} parent=47 // pred_check_branch
        %586 = sbr.rel (%p584) target = $region52
      $region51: #{tpu_custom_call.1} parent=47 // pred_region
        %s587 = smul.u32 2, %s24
        %p588 = scmp.lt.s32.totalorder %s23, 1
        %s589 = scalar_select %p588, %s23, 1
        %p590 = scmp.lt.s32.totalorder %s587, 1
        %s591 = scalar_select %p590, %s587, 1
        %s592 = smul.addr %s589, 8
        %s593 = sadd.s32 %s591, %s592
        %s594 = smul.addr %s593, 8
        %s595 = scalar_lea.vmem %s3, %s594
      $region52: #{tpu_custom_call.1} parent=47 // pred_fallthru
        _
      // Predicated region
      $region53: #{tpu_custom_call.1} parent=47 // pred_check
        %p596 = pneg %p153
      $region54: #{tpu_custom_call.1} parent=47 // pred_check_branch
        %598 = sbr.rel (%p596) target = $region56
      $region55: #{tpu_custom_call.1} parent=47 // pred_region
        %s599 = smul.u32 2, %s24
        %p600 = scmp.lt.s32.totalorder %s23, 1
        %s601 = scalar_select %p600, %s23, 1
        %p602 = scmp.lt.s32.totalorder %s599, 1
        %s603 = scalar_select %p602, %s599, 1
        %s604 = smul.addr %s601, 8
        %s605 = sadd.s32 %s603, %s604
        %s606 = smul.addr %s605, 8
        %s607 = scalar_lea.vmem %s4, %s606
      $region56: #{tpu_custom_call.1} parent=47 // pred_fallthru
        _
      // Predicated region
      $region57: #{tpu_custom_call.1} parent=47 // pred_check
        %p608 = pneg %p181
      $region58: #{tpu_custom_call.1} parent=47 // pred_check_branch
        %610 = sbr.rel (%p608) target = $region60
      $region59: #{tpu_custom_call.1} parent=47 // pred_region
        %s611 = smul.u32 2, %s24
        %p612 = scmp.lt.s32.totalorder %s23, 1
        %s613 = scalar_select %p612, %s23, 1
        %p614 = scmp.lt.s32.totalorder %s611, 1
        %s615 = scalar_select %p614, %s611, 1
        %s616 = smul.addr %s613, 8
        %s617 = sadd.s32 %s615, %s616
        %s618 = smul.addr %s617, 8
        %s619 = scalar_lea.vmem %s5, %s618
      $region60: #{tpu_custom_call.1} parent=47 // pred_fallthru
        _
    $region48: #{tpu_custom_call.1} parent=5 // pred_fallthru
      _
  $region6: #{tpu_custom_call.1} parent=0 // loop_footer
    %s16 = sadd.s32 1, %s12
  $region7: #{tpu_custom_call.1} parent=0 // loop_footer_branch
    %11 = sbr.rel target = $region3
  $region8: #{tpu_custom_call.1} parent=0 // loop_exit
    _

</llo_original>
